<compile_context>
chip_gen: v5e
topology: v5e:2x2
jax: 0.10.0
libtpu: 0.0.40
codegen_flags: <defaults>
</compile_context>

<pallas_src>
import functools

import jax
import jax.numpy as jnp
from jax.experimental import pallas as pl
from jax.experimental.pallas import tpu as pltpu


def _contrastive_kernel(x0_ref, x1_ref, y_ref, loss_part_ref, mdist_ref, *,
                        margin, batch, tile_b):
    i = pl.program_id(0)

    # Cast to f32 in-kernel; keeps HBM traffic in the caller's (possibly bf16)
    # dtype on this bandwidth-bound kernel.  VALU/EUP work is filler under DMA.
    x0 = x0_ref[...].astype(jnp.float32)            # (TB, D)
    x1 = x1_ref[...].astype(jnp.float32)            # (TB, D)
    y = y_ref[...].astype(jnp.float32)              # (TB, 1)

    diff = x0 - x1
    dist_sq = jnp.sum(diff * diff, axis=1, keepdims=True)   # (TB, 1)
    dist = jnp.sqrt(dist_sq + 1e-06)                         # (TB, 1)
    mdist = margin - dist                                    # (TB, 1)
    clamped = jnp.maximum(mdist, 0.0)                        # (TB, 1)

    per_sample = y * dist_sq + (1.0 - y) * clamped * clamped  # (TB, 1)

    # Mask rows past the real batch (ragged last tile) BEFORE the cross-row
    # sum so stale VMEM garbage (possibly Inf/NaN once squared) cannot leak
    # into the loss.  mdist writeback past the array bound is clipped by
    # Pallas, so only the reduction needs the mask.
    row = jax.lax.broadcasted_iota(jnp.int32, (tile_b, 1), 0) + i * tile_b
    per_sample = jnp.where(row < batch, per_sample, 0.0)

    mdist_ref[...] = mdist
    # Per-tile partial sum -> (1, 1) stored into this tile's (1, 1, 1) block.
    loss_part_ref[0] = jnp.sum(per_sample, axis=(0, 1), keepdims=True)


def _sublane_multiple(dtype):
    """Rows per packed sublane group: 8 for f32, 16 for bf16, 32 for int8/fp8."""
    itemsize = jnp.dtype(dtype).itemsize
    return max(8, 32 // max(1, itemsize))


def _round_up(x, m):
    return (x + m - 1) // m * m


def _choose_tile(batch, dim, dtype):
    """Pick the batch tile purely by VMEM bytes (~8 MiB per input tile).

    No absolute row cap; rounding is dtype-aware; the tile is additionally
    capped so the grid has >= 2 steps (v7x megacore) whenever B allows it.
    """
    itemsize = jnp.dtype(dtype).itemsize
    sub = _sublane_multiple(dtype)

    target_bytes = 8 * 1024 * 1024                      # per input tile
    tb = (target_bytes // max(1, dim * itemsize)) // sub * sub
    tb = max(sub, int(tb))

    # Guarantee at least 2 grid steps (and an even split) for v7x megacore.
    half = _round_up(-(-batch // 2), sub)
    tb = min(tb, half)

    if tb >= batch:
        return batch  # single tile; full-extent block shape is always legal
    return tb


def contrastive_loss(x0, x1, y, margin=1.0, tile_b=None):
    """Pallas implementation of ContrastiveLoss.forward.

    Args:
      x0, x1: (B, D) embeddings (f32 or bf16).
      y:      (B,)   labels (1 = similar pair, 0 = dissimilar).
    Returns:
      (loss, mdist) with loss a scalar and mdist of shape (B,), matching the
      PyTorch module (loss = sum/B, mdist = margin - dist before clamping).
    """
    B, D = x0.shape
    itemsize = jnp.dtype(x0.dtype).itemsize
    sub = _sublane_multiple(x0.dtype)

    if tile_b is None:
        tb = _choose_tile(B, D, x0.dtype)
    else:
        tb = int(tile_b)
        if tb >= B:
            tb = B
        elif tb % sub != 0:
            raise ValueError(
                f"tile_b must be a multiple of {sub} for dtype {x0.dtype} "
                f"(or >= B)")

    n_tiles = pl.cdiv(B, tb)
    y2d = y.reshape(B, 1)

    # VMEM budget: 2 inputs x 2 pipeline buffers x tile + small outputs/slack.
    # Capped at 48 MiB so it always fits v7x's 64 MiB physical VMEM per TC
    # (128 MiB on v5e/v6e), floored at the smallest scoped default.
    tile_bytes = tb * D * itemsize
    vmem_limit = int(min(48 << 20, max(16 << 20, 4 * tile_bytes + (4 << 20))))

    kernel = functools.partial(
        _contrastive_kernel, margin=float(margin), batch=B, tile_b=tb)

    # TODO(synk): for extremely wide D where a single (tb, D) tile would not
    # fit VMEM, add D as a trailing "arbitrary" reduction grid axis with a
    # (tb, 1) dist_sq accumulator; not needed for typical embedding widths.
    loss_parts, mdist = pl.pallas_call(
        kernel,
        grid=(n_tiles,),
        out_shape=(
            jax.ShapeDtypeStruct((n_tiles, 1, 1), jnp.float32),  # partial sums
            jax.ShapeDtypeStruct((B, 1), jnp.float32),           # mdist column
        ),
        in_specs=[
            pl.BlockSpec((tb, D), lambda i: (i, 0)),
            pl.BlockSpec((tb, D), lambda i: (i, 0)),
            pl.BlockSpec((tb, 1), lambda i: (i, 0)),
        ],
        out_specs=(
            pl.BlockSpec((1, 1, 1), lambda i: (i, 0, 0)),
            pl.BlockSpec((tb, 1), lambda i: (i, 0)),
        ),
        compiler_params=pltpu.CompilerParams(
            dimension_semantics=("parallel",),
            vmem_limit_bytes=vmem_limit),
    )(x0, x1, y2d)

    loss = jnp.sum(loss_parts) / jnp.float32(B)
    return loss, mdist.reshape(B)


def _reference(x0, x1, y, margin=1.0):
    diff = x0.astype(jnp.float32) - x1.astype(jnp.float32)
    dist_sq = jnp.sum(diff * diff, axis=1)
    dist = jnp.sqrt(dist_sq + 1e-06)
    mdist = margin - dist
    clamped = jnp.maximum(mdist, 0.0)
    loss = y.astype(jnp.float32) * dist_sq + (1.0 - y.astype(jnp.float32)) * clamped * clamped
    return jnp.sum(loss) / x0.shape[0], mdist


if __name__ == "__main__":
    key = jax.random.PRNGKey(0)
    k0, k1, k2 = jax.random.split(key, 3)

    # Test 1: small, single-tile path (f32).
    B, D = 8, 32
    x0 = jax.random.normal(k0, (B, D), dtype=jnp.float32)
    x1 = jax.random.normal(k1, (B, D), dtype=jnp.float32)
    y = jax.random.bernoulli(k2, 0.5, (B,)).astype(jnp.float32)

    loss, mdist = contrastive_loss(x0, x1, y, margin=1.0)
    jax.block_until_ready((loss, mdist))

    ref_loss, ref_mdist = _reference(x0, x1, y, margin=1.0)
    assert jnp.allclose(loss, ref_loss, atol=1e-5, rtol=1e-5), (loss, ref_loss)
    assert jnp.allclose(mdist, ref_mdist, atol=1e-5, rtol=1e-5)

    # Test 2: multi-tile grid with a ragged last tile (exercises masking).
    B2, D2 = 20, 32
    k3, k4, k5 = jax.random.split(k2, 3)
    x0b = jax.random.normal(k3, (B2, D2), dtype=jnp.float32)
    x1b = jax.random.normal(k4, (B2, D2), dtype=jnp.float32)
    yb = jax.random.bernoulli(k5, 0.5, (B2,)).astype(jnp.float32)

    loss2, mdist2 = contrastive_loss(x0b, x1b, yb, margin=0.75, tile_b=8)
    jax.block_until_ready((loss2, mdist2))

    ref_loss2, ref_mdist2 = _reference(x0b, x1b, yb, margin=0.75)
    assert jnp.allclose(loss2, ref_loss2, atol=1e-5, rtol=1e-5), (loss2, ref_loss2)
    assert jnp.allclose(mdist2, ref_mdist2, atol=1e-5, rtol=1e-5)

    # Test 3: bf16 inputs, auto tile (exercises dtype-aware sublane rounding
    # and the >=2-grid-steps cap; bf16->f32 upcast is exact so tight tol is ok).
    B3, D3 = 48, 64
    k6, k7, k8 = jax.random.split(k5, 3)
    x0c = jax.random.normal(k6, (B3, D3), dtype=jnp.float32).astype(jnp.bfloat16)
    x1c = jax.random.normal(k7, (B3, D3), dtype=jnp.float32).astype(jnp.bfloat16)
    yc = jax.random.bernoulli(k8, 0.5, (B3,)).astype(jnp.float32)

    loss3, mdist3 = contrastive_loss(x0c, x1c, yc, margin=1.0)
    jax.block_until_ready((loss3, mdist3))

    ref_loss3, ref_mdist3 = _reference(x0c, x1c, yc, margin=1.0)
    assert jnp.allclose(loss3, ref_loss3, atol=1e-5, rtol=1e-5), (loss3, ref_loss3)
    assert jnp.allclose(mdist3, ref_mdist3, atol=1e-5, rtol=1e-5)

    print("KERNEL_OK")
</pallas_src>

<mosaic_0001>
module attributes {stable_mosaic.version = 11 : i64} {
  func.func @_contrastive_kernel(%arg0: i32, %arg1: memref<8x32xf32, #tpu.memory_space<vmem>>, %arg2: memref<8x32xf32, #tpu.memory_space<vmem>>, %arg3: memref<8x1xf32, #tpu.memory_space<vmem>>, %arg4: memref<1x1x1xf32, #tpu.memory_space<vmem>>, %arg5: memref<8x1xf32, #tpu.memory_space<vmem>>) attributes {dimension_semantics = [#tpu.dimension_semantics<parallel>], iteration_bounds = array<i64: 1>, scalar_prefetch = 0 : i64, scratch_operands = 0 : i64, tpu.core_type = #tpu.core_type<tc>, window_params = [{transform_indices = @transform_0, window_bounds = array<i64: 8, 32>}, {transform_indices = @transform_1, window_bounds = array<i64: 8, 32>}, {transform_indices = @transform_2, window_bounds = array<i64: 8, 1>}, {transform_indices = @transform_3, window_bounds = array<i64: 1, 1, 1>}, {transform_indices = @transform_4, window_bounds = array<i64: 8, 1>}]} {
    %c0 = arith.constant 0 : index
    %c0_0 = arith.constant 0 : index
    %0 = vector.load %arg1[%c0, %c0_0] : memref<8x32xf32, #tpu.memory_space<vmem>>, vector<8x32xf32>
    %c0_1 = arith.constant 0 : index
    %c0_2 = arith.constant 0 : index
    %1 = vector.load %arg2[%c0_1, %c0_2] : memref<8x32xf32, #tpu.memory_space<vmem>>, vector<8x32xf32>
    %c0_3 = arith.constant 0 : index
    %c0_4 = arith.constant 0 : index
    %2 = vector.load %arg3[%c0_3, %c0_4] : memref<8x1xf32, #tpu.memory_space<vmem>>, vector<8x1xf32>
    %3 = arith.subf %0, %1 : vector<8x32xf32>
    %4 = arith.mulf %3, %3 : vector<8x32xf32>
    %cst = arith.constant dense<0.000000e+00> : vector<8xf32>
    %5 = vector.multi_reduction <add>, %4, %cst [1] : vector<8x32xf32> to vector<8xf32>
    %6 = vector.shape_cast %5 : vector<8xf32> to vector<8x1xf32>
    %cst_5 = arith.constant 9.99999997E-7 : f32
    %7 = vector.broadcast %cst_5 : f32 to vector<8x1xf32>
    %8 = arith.addf %6, %7 : vector<8x1xf32>
    %9 = math.sqrt %8 : vector<8x1xf32>
    %cst_6 = arith.constant 1.000000e+00 : f32
    %10 = vector.broadcast %cst_6 : f32 to vector<8x1xf32>
    %11 = arith.subf %10, %9 : vector<8x1xf32>
    %cst_7 = arith.constant 0.000000e+00 : f32
    %12 = vector.broadcast %cst_7 : f32 to vector<8x1xf32>
    %13 = arith.maximumf %11, %12 : vector<8x1xf32>
    %14 = arith.mulf %2, %6 : vector<8x1xf32>
    %cst_8 = arith.constant 1.000000e+00 : f32
    %15 = vector.broadcast %cst_8 : f32 to vector<8x1xf32>
    %16 = arith.subf %15, %2 : vector<8x1xf32>
    %17 = arith.mulf %16, %13 : vector<8x1xf32>
    %18 = arith.mulf %17, %13 : vector<8x1xf32>
    %19 = arith.addf %14, %18 : vector<8x1xf32>
    %20 = tpu.iota {dimensions = array<i32: 0>} : vector<8x1xi32>
    %c8_i32 = arith.constant 8 : i32
    %21 = arith.muli %arg0, %c8_i32 : i32
    %22 = vector.broadcast %21 : i32 to vector<8x1xi32>
    %23 = arith.addi %20, %22 : vector<8x1xi32>
    %c8_i32_9 = arith.constant 8 : i32
    %24 = vector.broadcast %c8_i32_9 : i32 to vector<8x1xi32>
    %25 = arith.cmpi slt, %23, %24 : vector<8x1xi32>
    %cst_10 = arith.constant 0.000000e+00 : f32
    %26 = vector.broadcast %cst_10 : f32 to vector<8x1xf32>
    %27 = arith.select %25, %19, %26 : vector<8x1xi1>, vector<8x1xf32>
    %c0_11 = arith.constant 0 : index
    %c0_12 = arith.constant 0 : index
    %28 = vector.load %arg5[%c0_11, %c0_12] : memref<8x1xf32, #tpu.memory_space<vmem>>, vector<8x1xf32>
    tpu.vector_store %arg5[%c0_11, %c0_12], %11 {strides = array<i32>} : memref<8x1xf32, #tpu.memory_space<vmem>>, vector<8x1xf32>,
    %29 = vector.shape_cast %27 : vector<8x1xf32> to vector<1x8x1xf32>
    %cst_13 = arith.constant dense<0.000000e+00> : vector<1xf32>
    %30 = vector.multi_reduction <add>, %29, %cst_13 [1, 2] : vector<1x8x1xf32> to vector<1xf32>
    %31 = vector.shape_cast %30 : vector<1xf32> to vector<1x1x1xf32>
    %32 = vector.extract %31[0, 0, 0] : f32 from vector<1x1x1xf32>
    %33 = vector.broadcast %32 : f32 to vector<1x1xf32>
    %c0_14 = arith.constant 0 : index
    %c0_15 = arith.constant 0 : index
    %c0_16 = arith.constant 0 : index
    %34 = vector.load %arg4[%c0_14, %c0_15, %c0_16] : memref<1x1x1xf32, #tpu.memory_space<vmem>>, vector<1x1x1xf32>
    %35 = vector.shape_cast %34 : vector<1x1x1xf32> to vector<1x1xf32>
    %36 = vector.shape_cast %33 : vector<1x1xf32> to vector<1x1x1xf32>
    tpu.vector_store %arg4[%c0_14, %c0_15, %c0_16], %36 {strides = array<i32>} : memref<1x1x1xf32, #tpu.memory_space<vmem>>, vector<1x1x1xf32>,
    return
  }
  func.func @transform_0(%arg0: i32) -> (i32, i32) {
    %c0_i32 = arith.constant 0 : i32
    %c0_i32_0 = arith.constant 0 : i32
    return %arg0, %c0_i32 : i32, i32
  }
  func.func @transform_1(%arg0: i32) -> (i32, i32) {
    %c0_i32 = arith.constant 0 : i32
    %c0_i32_0 = arith.constant 0 : i32
    return %arg0, %c0_i32 : i32, i32
  }
  func.func @transform_2(%arg0: i32) -> (i32, i32) {
    %c0_i32 = arith.constant 0 : i32
    %c0_i32_0 = arith.constant 0 : i32
    return %arg0, %c0_i32 : i32, i32
  }
  func.func @transform_3(%arg0: i32) -> (i32, i32, i32) {
    %c0_i32 = arith.constant 0 : i32
    %c0_i32_0 = arith.constant 0 : i32
    %c0_i32_1 = arith.constant 0 : i32
    return %arg0, %c0_i32, %c0_i32_0 : i32, i32, i32
  }
  func.func @transform_4(%arg0: i32) -> (i32, i32) {
    %c0_i32 = arith.constant 0 : i32
    %c0_i32_0 = arith.constant 0 : i32
    return %arg0, %c0_i32 : i32, i32
  }
}

</mosaic_0001>

<llo_original>
// kernel: tpu_custom_call.1
$region0: #{tpu_custom_call.1}
  #allocation0 [shape = 'u32[]', space=smem, size = 0x4, offset = 0x4, fixed_abs, tag = 'smem constant byte address 0x4 - core index']
  #allocation1 [shape = 'u32[72,128]{1,0:T(1,128)}', space=vmem, size = 0x9000, scoped, tag = 'internal scratch']
  %s0 = inlined_call_operand.vmem [shape: f32[8,32], index: 0, kind: input, shape index: {}]
  %s1 = inlined_call_operand.hbm [shape: f32[8,32], index: 1, kind: input, shape index: {}]
  %s2 = inlined_call_operand.vmem [shape: f32[8,1], index: 2, kind: input, shape index: {}]
  %s3 = inlined_call_operand.hbm [shape: f32[1,1,1], index: 3, kind: output, shape index: {0}]
  %s4 = inlined_call_operand.vmem [shape: f32[8,1], index: 4, kind: output, shape index: {1}]
  %5 = xla_tuple %s3, %s4
  %s6 = sld [smem:[#allocation0]]
  $region34: #{tpu_custom_call.1} parent=0
    _
  %s8 = ssub.s32 1, %s6
  %s9 = scalar_select 0, %s8, %s6
  $region1: #{tpu_custom_call.1} parent=0
    #allocation2 [shape = 'u8[4096]{0}', space=vmem, size = 0x1000, scoped, tag = 'input window, operand 1, single buffered']
    #allocation3 [shape = 's32[1]{0}', space=sflag, size = 0x4, scoped, tag = 'scoped memory for tpu_custom_call.1']
    #allocation4 [shape = 's32[1]{0}', space=sflag, size = 0x4, scoped, tag = 'scoped memory for tpu_custom_call.1']
    #allocation5 [shape = 'u8[512]{0}', space=vmem, size = 0x400, scoped, tag = 'output window, operand 0, single buffered']
    %10 = vsyncpa [#allocation3], 0
    %11 = vsyncpa [#allocation4], 0
    // Predicated region
    $region2: #{tpu_custom_call.1} parent=1 // pred_check
      _
    $region3: #{tpu_custom_call.1} parent=1 // pred_check_branch
      %13 = sbr.rel (0) target = $region5
    $region4: #{tpu_custom_call.1} parent=1 // pred_region
      _
    $region5: #{tpu_custom_call.1} parent=1 // pred_fallthru
      _
    // Predicated region
    $region6: #{tpu_custom_call.1} parent=1 // pred_check
      _
    $region7: #{tpu_custom_call.1} parent=1 // pred_check_branch
      %15 = sbr.rel (0) target = $region9
    $region8: #{tpu_custom_call.1} parent=1 // pred_region
      %17 = vsyncadd [#allocation3], 0
      %s19 = sshll.u32 %s1, 4
      %s20 = int_to_ptr.hbm [resolvable:$true] %s19
      %s21 = sshll.u32 [#allocation2], 4
      %s22 = int_to_ptr.vmem [resolvable:$true] %s21
      %24 = dma.hbm_to_vmem [thread:$0]  %s20, 128, %s22, [#allocation3]
    $region9: #{tpu_custom_call.1} parent=1 // pred_fallthru
      _
    // Predicated region
    $region10: #{tpu_custom_call.1} parent=1 // pred_check
      _
    $region11: #{tpu_custom_call.1} parent=1 // pred_check_branch
      %26 = sbr.rel (0) target = $region13
    $region12: #{tpu_custom_call.1} parent=1 // pred_region
      _
    $region13: #{tpu_custom_call.1} parent=1 // pred_fallthru
      _
    // Predicated region
    $region14: #{tpu_custom_call.1} parent=1 // pred_check
      _
    $region15: #{tpu_custom_call.1} parent=1 // pred_check_branch
      %28 = sbr.rel (0) target = $region17
    $region16: #{tpu_custom_call.1} parent=1 // pred_region
      %30 = dma.done [#allocation3], 128
    $region17: #{tpu_custom_call.1} parent=1 // pred_fallthru
      _
    %v31 = vld [vmem:[%s0] sm:$0xff]
    %v32 = vld [vmem:[#allocation2] sm:$0xff]
    %v33 = vld [vmem:[%s2] sm:$0xff]
    %v34 = vsub.f32 %v31, %v32
    %v35 = vmul.f32 %v34, %v34
    %vm36 = vcmask 261120
    %v37 = vsel %vm36, %v35, 0.0
    %38 = vadd.xlane.f32.xlu0 %v37
    %v39 = vpop.xlane.xlu0 %38
    %v40 = vadd.f32 %v39, 1e-06
    %v41 = vrsqrt.pop %v40
    %v42 = vmul.f32 %v41, %v40
    %v43 = vmul.f32 %v42, %v41
    %v44 = vmul.f32 0.5, %v43
    %v45 = vsub.f32 1.5, %v44
    %v46 = vmul.f32 %v41, %v45
    %v47 = vmul.f32 %v40, %v46
    %vm48 = vcmp.eq.f32.partialorder %v40, inf
    %v49 = vsel %vm48, %v40, %v47
    %vm50 = vcmp.eq.f32.partialorder %v40, 0.0
    %v51 = vand.u32 %v40, 2147483648
    %v52 = vsel %vm50, %v51, %v49
    %v53 = vsub.f32 1.0, %v52
    %v54 = vmax.f32 %v53, 0.0
    %v55 = vmul.f32 %v33, %v39
    %v56 = vsub.f32 1.0, %v33
    %v57 = vmul.f32 %v56, %v54
    %v58 = vmul.f32 %v57, %v54
    %v59 = vadd.f32 %v55, %v58
    %v60 = vlaneseq
    %v61 = vshrl.u32 %v60, 7
    %s62 = smul.u32 0, 8
    %v63 = vstv %s62
    %v64 = vadd.s32 %v61, %v63
    %vm65 = vcmp.lt.s32.totalorder %v64, 8
    %v66 = vsel %vm65, %v59, 0.0
    %vm67 = vcmask 7168
    %68 = vst.msk [vmem:[%s4] sm:$0xff] %vm67, %v53
    %v69 = vsel %vm67, %v66, 0.0
    %70 = vadd.xlane.f32.xlu0 %v69
    %v71 = vpop.xlane.xlu0 %70
    %v72 = vrot.slane %v71, 4
    %v73 = vadd.f32 %v71, %v72
    %v74 = vrot.slane %v73, 2
    %v75 = vadd.f32 %v73, %v74
    %v76 = vrot.slane %v75, 1
    %v77 = vadd.f32 %v75, %v76
    %s78 = vtos %v77
    %v79 = vstv %s78
    %vm80 = vcmask 0
    %81 = vst.msk [vmem:[#allocation5] sm:$0x1] %vm80, %v79
    // Predicated region
    $region18: #{tpu_custom_call.1} parent=1 // pred_check
      _
    $region19: #{tpu_custom_call.1} parent=1 // pred_check_branch
      %83 = sbr.rel (0) target = $region21
    $region20: #{tpu_custom_call.1} parent=1 // pred_region
      %85 = vsyncadd [#allocation4], 0
      %s87 = sshll.u32 [#allocation5], 4
      %s88 = int_to_ptr.vmem [resolvable:$true] %s87
      %s89 = sshll.u32 %s3, 4
      %s90 = int_to_ptr.hbm [resolvable:$true] %s89
      %92 = dma.vmem_to_hbm [thread:$0]  %s88, 16, %s90, [#allocation4]
    $region21: #{tpu_custom_call.1} parent=1 // pred_fallthru
      _
    // Predicated region
    $region22: #{tpu_custom_call.1} parent=1 // pred_check
      _
    $region23: #{tpu_custom_call.1} parent=1 // pred_check_branch
      %94 = sbr.rel (0) target = $region25
    $region24: #{tpu_custom_call.1} parent=1 // pred_region
      _
    $region25: #{tpu_custom_call.1} parent=1 // pred_fallthru
      _
    // Predicated region
    $region26: #{tpu_custom_call.1} parent=1 // pred_check
      _
    $region27: #{tpu_custom_call.1} parent=1 // pred_check_branch
      %96 = sbr.rel (0) target = $region29
    $region28: #{tpu_custom_call.1} parent=1 // pred_region
      %98 = dma.done [#allocation4], 16
    $region29: #{tpu_custom_call.1} parent=1 // pred_fallthru
      _
    // Predicated region
    $region30: #{tpu_custom_call.1} parent=1 // pred_check
      _
    $region31: #{tpu_custom_call.1} parent=1 // pred_check_branch
      %100 = sbr.rel (0) target = $region33
    $region32: #{tpu_custom_call.1} parent=1 // pred_region
      _
    $region33: #{tpu_custom_call.1} parent=1 // pred_fallthru
      _
    %101 = vsyncpa [#allocation3], 1
    %102 = vsyncpa [#allocation4], 1

</llo_original>
